<compile_context>
chip_gen: v5e
topology: v5e:2x2
jax: 0.10.0
libtpu: 0.0.40
codegen_flags: <defaults>
</compile_context>

<pallas_src>
import jax
import jax.numpy as jnp
from jax.experimental import pallas as pl
from jax.experimental.pallas import tpu as pltpu

IN_FEATURES = 5
HIDDEN = 64
N_OUT = 3
PAD_N = 8            # affine2 / output columns padded 3 -> 8 (== full last dim)
NEG_BIG = -1e30      # wrapper-side Python float (never captured by the kernel)


# TODO(synk): train-mode Dropout(p=0.6) (random mask + 1/(1-p) scaling) is not
# reproduced; this kernel implements the deterministic eval-mode forward
# (dropout == identity).  pltpu.prng_seed/prng_random_bits could provide a
# train-mode mask if required.
def policy_kernel(x_ref, w1_ref, b1_ref, w2_ref, b2_ref, out_ref):
    x = x_ref[...]                                              # (tb, 5)  f32
    # affine1: (tb,5) @ (5,64) + (1,64)
    h = jnp.dot(x, w1_ref[...], preferred_element_type=jnp.float32) + b1_ref[...]
    # dropout (eval mode: identity) + relu
    h = jnp.maximum(h, 0.0)                                     # (tb, 64)
    # affine2 padded to 8 cols: padded w2 cols are 0, padded b2 cols are -1e30,
    # so padded logits are -1e30 and contribute exactly zero probability.
    s = jnp.dot(h, w2_ref[...], preferred_element_type=jnp.float32) + b2_ref[...]
    # numerically-stable softmax over the 8-lane axis (exact normalization)
    m = jnp.max(s, axis=1, keepdims=True)                       # (tb, 1)
    e = jnp.exp(s - m)                                          # (tb, 8)
    inv = 1.0 / jnp.sum(e, axis=1, keepdims=True)               # (tb, 1) exact
    out_ref[...] = e * inv                                      # (tb, 8)


def _round_up(n, m):
    return (n + m - 1) // m * m


def prepare_params(w1, b1, w2, b2):
    """One-time padding/reshape of the weights (hoisted out of the forward).

    w1: (5, 64), b1: (64,), w2: (64, 3), b2: (3,)  (already x @ W layout).
    """
    w1_p = jnp.asarray(w1, jnp.float32)                          # (5, 64)
    b1_p = jnp.asarray(b1, jnp.float32).reshape(1, HIDDEN)       # (1, 64)
    w2_p = jnp.zeros((HIDDEN, PAD_N), jnp.float32).at[:, :N_OUT].set(
        jnp.asarray(w2, jnp.float32))                            # (64, 8)
    b2_p = jnp.full((1, PAD_N), NEG_BIG, jnp.float32).at[:, :N_OUT].set(
        jnp.asarray(b2, jnp.float32).reshape(1, N_OUT))          # (1, 8)
    return w1_p, b1_p, w2_p, b2_p


def policy_forward(x, params, *, tb=8192):
    """x: (B, 5) f32, params: output of prepare_params.  Returns (B, 3) probs."""
    w1_p, b1_p, w2_p, b2_p = params
    B, K = x.shape
    assert K == IN_FEATURES

    # Tile the batch: multiple of 8 sublanes; cap so large batches produce a
    # >=2-step "parallel" grid (v7x dual TensorCore).  No round-up of B itself:
    # the last block may overrun B, OOB rows are dropped on writeback.
    tb = max(8, min(tb, _round_up(pl.cdiv(B, 2), 8)))
    grid = (pl.cdiv(B, tb),)

    out = pl.pallas_call(
        policy_kernel,
        out_shape=jax.ShapeDtypeStruct((B, PAD_N), jnp.float32),
        grid=grid,
        in_specs=[
            pl.BlockSpec((tb, IN_FEATURES), lambda i: (i, 0)),     # x: batch-tiled
            pl.BlockSpec((IN_FEATURES, HIDDEN), lambda i: (0, 0)),  # w1: resident
            pl.BlockSpec((1, HIDDEN), lambda i: (0, 0)),            # b1: resident
            pl.BlockSpec((HIDDEN, PAD_N), lambda i: (0, 0)),        # w2: resident
            pl.BlockSpec((1, PAD_N), lambda i: (0, 0)),             # b2: resident
        ],
        out_specs=pl.BlockSpec((tb, PAD_N), lambda i: (i, 0)),
        compiler_params=pltpu.CompilerParams(
            dimension_semantics=("parallel",)),
    )(x, w1_p, b1_p, w2_p, b2_p)

    return out[:, :N_OUT]


def init_params(key):
    """Deterministic init matching nn.Linear's U(-1/sqrt(fan_in), 1/sqrt(fan_in)).

    Weights are returned as (in_features, out_features) -- transposed relative
    to PyTorch's (out, in) storage -- so the kernel computes x @ W + b.
    """
    k1, k2, k3, k4 = jax.random.split(key, 4)
    bound1 = 1.0 / jnp.sqrt(5.0)
    bound2 = 1.0 / jnp.sqrt(64.0)
    w1 = jax.random.uniform(k1, (IN_FEATURES, HIDDEN), jnp.float32, -bound1, bound1)
    b1 = jax.random.uniform(k2, (HIDDEN,), jnp.float32, -bound1, bound1)
    w2 = jax.random.uniform(k3, (HIDDEN, N_OUT), jnp.float32, -bound2, bound2)
    b2 = jax.random.uniform(k4, (N_OUT,), jnp.float32, -bound2, bound2)
    return w1, b1, w2, b2


def reference_forward(x, w1, b1, w2, b2):
    """Pure-JAX reference (eval-mode dropout) for correctness checking."""
    h = jnp.maximum(x @ w1 + b1[None, :], 0.0)
    s = h @ w2 + b2[None, :]
    return jax.nn.softmax(s, axis=1)


if __name__ == "__main__":
    key = jax.random.PRNGKey(0)
    k_param, k_x = jax.random.split(key)

    # Small batch of 8 observations, each with 5 features (Linear(5, 64) input).
    x = jax.random.normal(k_x, (8, IN_FEATURES), jnp.float32)
    w1, b1, w2, b2 = init_params(k_param)
    params = prepare_params(w1, b1, w2, b2)

    probs = policy_forward(x, params)
    probs = jax.block_until_ready(probs)

    ref = reference_forward(x, w1, b1, w2, b2)
    assert probs.shape == (8, N_OUT)
    assert jnp.allclose(jnp.sum(probs, axis=1), 1.0, atol=1e-5)
    assert jnp.allclose(probs, ref, atol=1e-5, rtol=1e-5)

    print("KERNEL_OK")
</pallas_src>

<mosaic_0001>
module attributes {stable_mosaic.version = 11 : i64} {
  func.func @policy_kernel(%arg0: i32, %arg1: memref<8x5xf32, #tpu.memory_space<vmem>>, %arg2: memref<5x64xf32, #tpu.memory_space<vmem>>, %arg3: memref<1x64xf32, #tpu.memory_space<vmem>>, %arg4: memref<64x8xf32, #tpu.memory_space<vmem>>, %arg5: memref<1x8xf32, #tpu.memory_space<vmem>>, %arg6: memref<8x8xf32, #tpu.memory_space<vmem>>) attributes {dimension_semantics = [#tpu.dimension_semantics<parallel>], iteration_bounds = array<i64: 1>, scalar_prefetch = 0 : i64, scratch_operands = 0 : i64, tpu.core_type = #tpu.core_type<tc>, window_params = [{transform_indices = @transform_0, window_bounds = array<i64: 8, 5>}, {pipeline_mode = #tpu.pipeline_mode<synchronous>, transform_indices = @transform_1, window_bounds = array<i64: 5, 64>}, {pipeline_mode = #tpu.pipeline_mode<synchronous>, transform_indices = @transform_2, window_bounds = array<i64: 1, 64>}, {pipeline_mode = #tpu.pipeline_mode<synchronous>, transform_indices = @transform_3, window_bounds = array<i64: 64, 8>}, {pipeline_mode = #tpu.pipeline_mode<synchronous>, transform_indices = @transform_4, window_bounds = array<i64: 1, 8>}, {transform_indices = @transform_5, window_bounds = array<i64: 8, 8>}]} {
    %c0 = arith.constant 0 : index
    %c0_0 = arith.constant 0 : index
    %0 = vector.load %arg1[%c0, %c0_0] : memref<8x5xf32, #tpu.memory_space<vmem>>, vector<8x5xf32>
    %c0_1 = arith.constant 0 : index
    %c0_2 = arith.constant 0 : index
    %1 = vector.load %arg2[%c0_1, %c0_2] : memref<5x64xf32, #tpu.memory_space<vmem>>, vector<5x64xf32>
    %cst = arith.constant dense<0.000000e+00> : vector<8x64xf32>
    %2 = tpu.matmul %0, %1, %cst {dimension_numbers = #tpu.dot_dimension_numbers<[1], [0], [0], [1], [0, 0, 1, 1], [], []>} : vector<8x5xf32>, vector<5x64xf32>, vector<8x64xf32> -> vector<8x64xf32>
    %c0_3 = arith.constant 0 : index
    %c0_4 = arith.constant 0 : index
    %3 = vector.load %arg3[%c0_3, %c0_4] : memref<1x64xf32, #tpu.memory_space<vmem>>, vector<1x64xf32>
    %4 = vector.broadcast %3 : vector<1x64xf32> to vector<8x64xf32>
    %5 = arith.addf %2, %4 : vector<8x64xf32>
    %cst_5 = arith.constant 0.000000e+00 : f32
    %6 = vector.broadcast %cst_5 : f32 to vector<8x64xf32>
    %7 = arith.maximumf %5, %6 : vector<8x64xf32>
    %c0_6 = arith.constant 0 : index
    %c0_7 = arith.constant 0 : index
    %8 = vector.load %arg4[%c0_6, %c0_7] : memref<64x8xf32, #tpu.memory_space<vmem>>, vector<64x8xf32>
    %cst_8 = arith.constant dense<0.000000e+00> : vector<8x8xf32>
    %9 = tpu.matmul %7, %8, %cst_8 {dimension_numbers = #tpu.dot_dimension_numbers<[1], [0], [0], [1], [0, 0, 1, 1], [], []>} : vector<8x64xf32>, vector<64x8xf32>, vector<8x8xf32> -> vector<8x8xf32>
    %c0_9 = arith.constant 0 : index
    %c0_10 = arith.constant 0 : index
    %10 = vector.load %arg5[%c0_9, %c0_10] : memref<1x8xf32, #tpu.memory_space<vmem>>, vector<1x8xf32>
    %11 = vector.broadcast %10 : vector<1x8xf32> to vector<8x8xf32>
    %12 = arith.addf %9, %11 : vector<8x8xf32>
    %cst_11 = arith.constant dense<0xFF800000> : vector<8xf32>
    %13 = vector.multi_reduction <maximumf>, %12, %cst_11 [1] : vector<8x8xf32> to vector<8xf32>
    %14 = vector.shape_cast %13 : vector<8xf32> to vector<8x1xf32>
    %15 = vector.broadcast %14 : vector<8x1xf32> to vector<8x8xf32>
    %16 = arith.subf %12, %15 : vector<8x8xf32>
    %17 = math.exp %16 : vector<8x8xf32>
    %cst_12 = arith.constant dense<0.000000e+00> : vector<8xf32>
    %18 = vector.multi_reduction <add>, %17, %cst_12 [1] : vector<8x8xf32> to vector<8xf32>
    %19 = vector.shape_cast %18 : vector<8xf32> to vector<8x1xf32>
    %cst_13 = arith.constant 1.000000e+00 : f32
    %20 = vector.broadcast %cst_13 : f32 to vector<8x1xf32>
    %21 = arith.divf %20, %19 : vector<8x1xf32>
    %22 = vector.broadcast %21 : vector<8x1xf32> to vector<8x8xf32>
    %23 = arith.mulf %17, %22 : vector<8x8xf32>
    %c0_14 = arith.constant 0 : index
    %c0_15 = arith.constant 0 : index
    %24 = vector.load %arg6[%c0_14, %c0_15] : memref<8x8xf32, #tpu.memory_space<vmem>>, vector<8x8xf32>
    tpu.vector_store %arg6[%c0_14, %c0_15], %23 {strides = array<i32>} : memref<8x8xf32, #tpu.memory_space<vmem>>, vector<8x8xf32>,
    return
  }
  func.func @transform_0(%arg0: i32) -> (i32, i32) {
    %c0_i32 = arith.constant 0 : i32
    %c0_i32_0 = arith.constant 0 : i32
    return %arg0, %c0_i32 : i32, i32
  }
  func.func @transform_1(%arg0: i32) -> (i32, i32) {
    %c0_i32 = arith.constant 0 : i32
    %c0_i32_0 = arith.constant 0 : i32
    %c0_i32_1 = arith.constant 0 : i32
    return %c0_i32, %c0_i32_0 : i32, i32
  }
  func.func @transform_2(%arg0: i32) -> (i32, i32) {
    %c0_i32 = arith.constant 0 : i32
    %c0_i32_0 = arith.constant 0 : i32
    %c0_i32_1 = arith.constant 0 : i32
    return %c0_i32, %c0_i32_0 : i32, i32
  }
  func.func @transform_3(%arg0: i32) -> (i32, i32) {
    %c0_i32 = arith.constant 0 : i32
    %c0_i32_0 = arith.constant 0 : i32
    %c0_i32_1 = arith.constant 0 : i32
    return %c0_i32, %c0_i32_0 : i32, i32
  }
  func.func @transform_4(%arg0: i32) -> (i32, i32) {
    %c0_i32 = arith.constant 0 : i32
    %c0_i32_0 = arith.constant 0 : i32
    %c0_i32_1 = arith.constant 0 : i32
    return %c0_i32, %c0_i32_0 : i32, i32
  }
  func.func @transform_5(%arg0: i32) -> (i32, i32) {
    %c0_i32 = arith.constant 0 : i32
    %c0_i32_0 = arith.constant 0 : i32
    return %arg0, %c0_i32 : i32, i32
  }
}

</mosaic_0001>

<llo_original>
// kernel: tpu_custom_call.1
$region0: #{tpu_custom_call.1}
  #allocation0 [shape = 'u32[]', space=smem, size = 0x4, offset = 0x4, fixed_abs, tag = 'smem constant byte address 0x4 - core index']
  #allocation1 [shape = 'u32[72,128]{1,0:T(1,128)}', space=vmem, size = 0x9000, scoped, tag = 'internal scratch']
  %s0 = inlined_call_operand.vmem [shape: f32[8,5], index: 0, kind: input, shape index: {}]
  %s1 = inlined_call_operand.vmem [shape: f32[5,64], index: 1, kind: input, shape index: {}]
  %s2 = inlined_call_operand.vmem [shape: f32[1,64], index: 2, kind: input, shape index: {}]
  %s3 = inlined_call_operand.vmem [shape: f32[64,8], index: 3, kind: input, shape index: {}]
  %s4 = inlined_call_operand.vmem [shape: f32[1,8], index: 4, kind: input, shape index: {}]
  %s5 = inlined_call_operand.hbm [shape: f32[8,8], index: 5, kind: output, shape index: {}]
  %s6 = sld [smem:[#allocation0]]
  $region30: #{tpu_custom_call.1} parent=0
    _
  %s8 = ssub.s32 1, %s6
  %s9 = scalar_select 0, %s8, %s6
  $region1: #{tpu_custom_call.1} parent=0
    #allocation2 [shape = 'u8[4096]{0}', space=vmem, size = 0x1000, scoped, tag = 'output window, operand 0, single buffered']
    #allocation3 [shape = 's32[1]{0}', space=sflag, size = 0x4, scoped, tag = 'scoped memory for tpu_custom_call.1']
    %10 = vsyncpa [#allocation3], 0
    // Predicated region
    $region2: #{tpu_custom_call.1} parent=1 // pred_check
      _
    $region3: #{tpu_custom_call.1} parent=1 // pred_check_branch
      %12 = sbr.rel (0) target = $region5
    $region4: #{tpu_custom_call.1} parent=1 // pred_region
      _
    $region5: #{tpu_custom_call.1} parent=1 // pred_fallthru
      _
    // Predicated region
    $region6: #{tpu_custom_call.1} parent=1 // pred_check
      _
    $region7: #{tpu_custom_call.1} parent=1 // pred_check_branch
      %14 = sbr.rel (0) target = $region9
    $region8: #{tpu_custom_call.1} parent=1 // pred_region
      _
    $region9: #{tpu_custom_call.1} parent=1 // pred_fallthru
      _
    // Predicated region
    $region10: #{tpu_custom_call.1} parent=1 // pred_check
      _
    $region11: #{tpu_custom_call.1} parent=1 // pred_check_branch
      %16 = sbr.rel (0) target = $region13
    $region12: #{tpu_custom_call.1} parent=1 // pred_region
      _
    $region13: #{tpu_custom_call.1} parent=1 // pred_fallthru
      _
    // Predicated region
    $region14: #{tpu_custom_call.1} parent=1 // pred_check
      _
    $region15: #{tpu_custom_call.1} parent=1 // pred_check_branch
      %18 = sbr.rel (0) target = $region17
    $region16: #{tpu_custom_call.1} parent=1 // pred_region
      _
    $region17: #{tpu_custom_call.1} parent=1 // pred_fallthru
      _
    // Predicated region
    $region18: #{tpu_custom_call.1} parent=1 // pred_check
      _
    $region19: #{tpu_custom_call.1} parent=1 // pred_check_branch
      %20 = sbr.rel (0) target = $region21
    $region20: #{tpu_custom_call.1} parent=1 // pred_region
      _
    $region21: #{tpu_custom_call.1} parent=1 // pred_fallthru
      _
    %v21 = vld [vmem:[%s0] sm:$0xff]
    %v22 = vld [vmem:[%s1] sm:$0x1f]
    %v23 = vld [vmem:[%s2] sm:$0x1]
    %v25 = vperm.slane %v23, 0
    %vm27 = vcmask 39936
    %v29 = vsel %vm27, %v21, 0
    %vm31 = vcmask 1044480
    %v33 = vsel %vm31, %v22, 0
    %35 = vmatpush.msra.mxu0 0.0
    %36 = vmatpush.msra.mxu0 0.0
    %37 = vmatpush.msra.mxu0 0.0
    %38 = vmatpush.msra.mxu0 0.0
    %39 = vmatpush.msra.mxu0 0.0
    %40 = vmatpush.msra.mxu0 0.0
    %41 = vmatpush.msra.mxu0 0.0
    %42 = vmatpush.msra.mxu0 0.0
    %43 = vmatpush.msra.mxu0 0.0
    %44 = vmatpush.msra.mxu0 0.0
    %45 = vmatpush.msra.mxu0 0.0
    %46 = vmatpush.msra.mxu0 0.0
    %47 = vmatpush.msra.mxu0 0.0
    %48 = vmatpush.msra.mxu0 0.0
    %49 = vmatpush.msra.mxu0 0.0
    %50 = vmatpush.msra.mxu0 %v33
    %51 = vmatmul.f32.gmra.mxu0 %v29
    %v52 = vpop.f32.mrf.mxu0
    %v53 = vadd.f32 %v25, %v52
    %54 = vdwg.mxu0
    %v55 = vmax.f32 %v53, 0.0
    %v56 = vld [vmem:[%s3] sm:$0xff]
    %v57 = vld [vmem:[%s3 + $0x8] sm:$0xff]
    %v58 = vld [vmem:[%s3 + $0x10] sm:$0xff]
    %v59 = vld [vmem:[%s3 + $0x18] sm:$0xff]
    %v60 = vld [vmem:[%s3 + $0x20] sm:$0xff]
    %v61 = vld [vmem:[%s3 + $0x28] sm:$0xff]
    %v62 = vld [vmem:[%s3 + $0x30] sm:$0xff]
    %v63 = vld [vmem:[%s3 + $0x38] sm:$0xff]
    %v64 = vld [vmem:[%s4] sm:$0x1]
    %v66 = vperm.slane %v64, 0
    %vm68 = vcmask 523264
    %v70 = vsel %vm68, %v55, 0
    %72 = vmatpush.msra.mxu0 0.0
    %73 = vmatpush.msra.mxu0 0.0
    %74 = vmatpush.msra.mxu0 0.0
    %75 = vmatpush.msra.mxu0 0.0
    %76 = vmatpush.msra.mxu0 0.0
    %77 = vmatpush.msra.mxu0 0.0
    %78 = vmatpush.msra.mxu0 0.0
    %79 = vmatpush.msra.mxu0 0.0
    %80 = vmatpush.msra.mxu0 %v63
    %81 = vmatpush.msra.mxu0 %v62
    %82 = vmatpush.msra.mxu0 %v61
    %83 = vmatpush.msra.mxu0 %v60
    %84 = vmatpush.msra.mxu0 %v59
    %85 = vmatpush.msra.mxu0 %v58
    %86 = vmatpush.msra.mxu0 %v57
    %87 = vmatpush.msra.mxu0 %v56
    %88 = vmatmul.f32.gmra.mxu0 %v70
    %v89 = vpop.f32.mrf.mxu0
    %v90 = vadd.f32 %v66, %v89
    %91 = vdwg.mxu0
    %vm92 = vcmask 64512
    %v93 = vsel %vm92, %v90, -inf
    %94 = vmax.xlane.f32.xlu0 %v93
    %v95 = vpop.xlane.xlu0 %94
    %v96 = vsub.f32 %v90, %v95
    %v97 = vmul.f32 %v96, 1.442695
    %v98 = vpow.pop %v97
    %v99 = vsel %vm92, %v98, 0.0
    %100 = vadd.xlane.f32.xlu0 %v99
    %v101 = vpop.xlane.xlu0 %100
    %v102 = vrcp.pop %v101
    %v103 = vmul.f32 %v101, %v102
    %v104 = vsub.f32 1.0, %v103
    %v105 = vmul.f32 %v102, %v104
    %v106 = vadd.f32 %v102, %v105
    %vm107 = vweird.f32 %v101
    %vm108 = vweird.f32 %v102
    %vm109 = vmor %vm107, %vm108
    %v110 = vsel %vm109, %v102, %v106
    %v111 = vand.u32 2147483647, %v101
    %vm112 = vcmp.eq.f32.partialorder %v111, 8.507059e+37
    %v113 = vand.u32 %v101, 2147483648
    %v114 = vor.u32 1.1754944e-38, %v113
    %v115 = vsel %vm112, %v114, %v110
    %v116 = vmul.f32 1.0, %v115
    %v117 = vmul.f32 %v98, %v116
    %118 = vst.msk [vmem:[#allocation2] sm:$0xff] %vm92, %v117
    // Predicated region
    $region22: #{tpu_custom_call.1} parent=1 // pred_check
      _
    $region23: #{tpu_custom_call.1} parent=1 // pred_check_branch
      %120 = sbr.rel (0) target = $region25
    $region24: #{tpu_custom_call.1} parent=1 // pred_region
      %122 = vsyncadd [#allocation3], 0
      %s124 = sshll.u32 [#allocation2], 4
      %s125 = int_to_ptr.vmem [resolvable:$true] %s124
      %s126 = sshll.u32 %s5, 4
      %s127 = int_to_ptr.hbm [resolvable:$true] %s126
      %129 = dma.vmem_to_hbm [thread:$0]  %s125, 128, %s127, [#allocation3]
    $region25: #{tpu_custom_call.1} parent=1 // pred_fallthru
      _
    // Predicated region
    $region26: #{tpu_custom_call.1} parent=1 // pred_check
      _
    $region27: #{tpu_custom_call.1} parent=1 // pred_check_branch
      %131 = sbr.rel (0) target = $region29
    $region28: #{tpu_custom_call.1} parent=1 // pred_region
      %133 = dma.done [#allocation3], 128
    $region29: #{tpu_custom_call.1} parent=1 // pred_fallthru
      _
    %134 = vsyncpa [#allocation3], 1

</llo_original>
